<compile_context>
chip_gen: v5e
topology: v5e:2x2
jax: 0.10.0
libtpu: 0.0.40
codegen_flags: <defaults>
</compile_context>

<pallas_src>
import math
import functools

import jax
import jax.numpy as jnp
from jax.experimental import pallas as pl
from jax.experimental.pallas import tpu as pltpu

# ---------------- config (small, deterministic) ----------------
BATCH = 2
N_CTX = 8          # pos == n_ctx (no kv cache)
D_MODEL = 32
N_HEADS = 4
D_HEAD = 8
ROTARY_DIM = 8     # <= d_head
ROTARY_BASE = 10000
ATTN_SCALE = math.sqrt(D_HEAD)
DTYPE = jnp.float32
MASK_BIAS = -1e30  # large finite negative (robust additive mask)
D_PAD = 128        # lane-dense output width (multiple of 128)


# ---------------- rotary sin/cos (buffer setup, plain JAX) ----------------
def calculate_sin_cos_rotary(rotary_dim, n_ctx, base=10000, dtype=jnp.float32):
    # GPT-NeoX style (rotary_adjacent_pairs=False): freq repeated '(2 d)'
    pos = jnp.arange(n_ctx, dtype=jnp.float32)
    dim = jnp.arange(rotary_dim // 2, dtype=jnp.float32)
    freq = base ** (dim / (rotary_dim / 2))
    freq = jnp.concatenate([freq, freq], axis=0)          # '(2 d)'
    angles = pos[:, None] / freq[None, :]
    return jnp.sin(angles).astype(dtype), jnp.cos(angles).astype(dtype)


# ---------------- Pallas kernel ----------------
def attention_kernel(x3_ref, w_ref, b_ref, rope_ref, mask_ref, wo_ref, bo_ref,
                     out_ref, *, n_heads, d_head, pos):
    P, H, Dh = pos, n_heads, d_head
    HD = H * Dh

    # One fused lane-dense projection matmul producing
    # [ q | k | v | rotate_half(q) | rotate_half(k) ] column groups.
    # (1/attn_scale already folded into the q-side weights/biases.)
    x3 = x3_ref[0]                                                  # [3P, D]
    qkv = jnp.dot(x3, w_ref[...],
                  preferred_element_type=jnp.float32) + b_ref[...]  # [3P, 5*HD]

    q = qkv[0 * P:1 * P, 0 * HD:1 * HD]    # from xq rows
    k = qkv[1 * P:2 * P, 1 * HD:2 * HD]    # from xk rows
    v = qkv[2 * P:3 * P, 2 * HD:3 * HD]    # from xv rows
    qf = qkv[0 * P:1 * P, 3 * HD:4 * HD]   # rotate_half(q)  (folded into weights)
    kf = qkv[1 * P:2 * P, 4 * HD:5 * HD]   # rotate_half(k)

    # RoPE, heads-on-lanes, pure VPU (no slicing / concat / roll in-kernel).
    cos = rope_ref[0]                                               # [P, HD]
    sin = rope_ref[1]
    q = q * cos + qf * sin
    k = k * cos + kf * sin

    # Per-head layout only for the batched QK^T / PV contractions.
    def split_heads(t):                                             # [P, HD] -> [H, P, Dh]
        return jnp.concatenate(
            [t[None, :, h * Dh:(h + 1) * Dh] for h in range(H)], axis=0)

    qh, kh, vh = split_heads(q), split_heads(k), split_heads(v)

    scores = jnp.einsum('htd,hsd->hts', qh, kh,
                        preferred_element_type=jnp.float32)         # [H, P, P]
    scores = scores + mask_ref[...][None]                           # additive causal bias

    # softmax (diagonal always unmasked -> denom > 0, no NaN scrub needed)
    m = jnp.max(scores, axis=-1, keepdims=True)
    e = jnp.exp(scores - m)
    denom = jnp.sum(e, axis=-1, keepdims=True)                      # [H, P, 1]

    # unnormalized PV matmul, then normalize via the EUP approximate reciprocal
    z = jnp.einsum('hts,hsd->htd', e, vh,
                   preferred_element_type=jnp.float32)              # [H, P, Dh]
    z = z * pl.reciprocal(denom, approx=True)

    # merge heads back onto lanes; single output projection (lane-dense [P, 128])
    z2d = jnp.concatenate([z[h] for h in range(H)], axis=-1)        # [P, HD]
    out = jnp.dot(z2d, wo_ref[...],
                  preferred_element_type=jnp.float32) + bo_ref[...]  # [P, D_PAD]
    out_ref[0] = out.astype(out_ref.dtype)


# ---------------- wrapper ----------------
@jax.jit
def attention_forward(qx, kx, vx, W_Q, W_K, W_V, W_O, b_Q, b_K, b_V, b_O,
                      sin, cos):
    B, P, D = qx.shape
    H, _, Dh = W_Q.shape
    HD = H * Dh
    rot = sin.shape[-1]
    n = rot // 2

    sin = sin[:P]
    cos = cos[:P]

    # ---- weight / bias packing (one-time prep; zero in-kernel cost) ----
    inv_scale = jnp.asarray(1.0 / ATTN_SCALE, DTYPE)
    wq, wk, wv = W_Q * inv_scale, W_K, W_V                 # fold 1/attn_scale into q-side
    bq, bk, bv = b_Q * inv_scale, b_K, b_V

    def to2d(w):    # [H, D, Dh] -> [D, H*Dh]  (heads-on-lanes columns)
        return jnp.transpose(w, (1, 0, 2)).reshape(D, HD)

    def flip_cols(t):
        # fold NeoX rotate-half into the weight/bias columns (exact signed permutation):
        # col j<n  <- -col (j+n);  col n<=j<rot <- col (j-n);  pass-through cols -> 0
        tr = t[..., :rot]
        zeros = jnp.zeros(t.shape[:-1] + (Dh - rot,), t.dtype)
        return jnp.concatenate([-tr[..., n:rot], tr[..., :n], zeros], axis=-1)

    w_all = jnp.concatenate(
        [to2d(wq), to2d(wk), to2d(wv), to2d(flip_cols(wq)), to2d(flip_cols(wk))],
        axis=-1)                                            # [D, 5*HD]
    b_all = jnp.concatenate(
        [bq.reshape(1, HD), bk.reshape(1, HD), bv.reshape(1, HD),
         flip_cols(bq).reshape(1, HD), flip_cols(bk).reshape(1, HD)],
        axis=-1)                                            # [1, 5*HD]

    # rotary tables, heads-on-lanes ([P, H*Dh]); pass-through lanes: cos=1, sin=0
    cos_hd = jnp.tile(jnp.concatenate(
        [cos, jnp.ones((P, Dh - rot), DTYPE)], axis=-1), (1, H))
    sin_hd = jnp.tile(jnp.concatenate(
        [sin, jnp.zeros((P, Dh - rot), DTYPE)], axis=-1), (1, H))
    rope_tab = jnp.stack([cos_hd, sin_hd], axis=0)          # [2, P, HD]

    # static additive causal mask (0 / -1e30): single add in-kernel, NaN-proof
    causal = jnp.tril(jnp.ones((P, P), dtype=bool))
    mask_bias = jnp.where(causal, 0.0, MASK_BIAS).astype(DTYPE)   # [P, P]

    # output projection, padded to 128 lanes (unmasked stores)
    wo_pad = jnp.pad(W_O.reshape(HD, D), ((0, 0), (0, D_PAD - D)))     # [HD, 128]
    bo_pad = jnp.pad(b_O.reshape(1, D), ((0, 0), (0, D_PAD - D)))      # [1, 128]

    # stack xq / xk / xv along rows so the fused projection is one matmul per step
    x3 = jnp.concatenate([qx, kx, vx], axis=1)              # [B, 3P, D]

    kernel = functools.partial(attention_kernel, n_heads=H, d_head=Dh, pos=P)

    # NOTE(production): on v6e/v7x cast x3 / w_all / wo_pad to bf16 here (keep the
    # softmax math in f32); at large n_ctx switch to flash-style (q_tile, kv_tile)
    # grid tiling with VMEM scratch and re-derive tiles for v7x's 64 MiB VMEM.
    out_pad = pl.pallas_call(
        kernel,
        out_shape=jax.ShapeDtypeStruct((B, P, D_PAD), DTYPE),
        grid_spec=pltpu.PrefetchScalarGridSpec(
            num_scalar_prefetch=0,
            grid=(B,),                                      # parallel over sequences (2 TCs on v7x)
            in_specs=[
                pl.BlockSpec((1, 3 * P, D), lambda b: (b, 0, 0)),   # stacked xq|xk|xv
                pl.BlockSpec((D, 5 * HD), lambda b: (0, 0)),        # fused W (resident)
                pl.BlockSpec((1, 5 * HD), lambda b: (0, 0)),        # fused bias
                pl.BlockSpec((2, P, HD), lambda b: (0, 0, 0)),      # cos/sin table
                pl.BlockSpec((P, P), lambda b: (0, 0)),             # additive causal mask
                pl.BlockSpec((HD, D_PAD), lambda b: (0, 0)),        # W_O (padded)
                pl.BlockSpec((1, D_PAD), lambda b: (0, 0)),         # b_O (padded)
            ],
            out_specs=pl.BlockSpec((1, P, D_PAD), lambda b: (b, 0, 0)),
        ),
        compiler_params=pltpu.CompilerParams(
            dimension_semantics=("parallel",)),
    )(x3, w_all, b_all, rope_tab, mask_bias, wo_pad, bo_pad)

    return out_pad[:, :, :D]


# ---------------- pure-JAX reference (mirrors the PyTorch forward) ----------------
def reference_forward(qx, kx, vx, W_Q, W_K, W_V, W_O, b_Q, b_K, b_V, b_O,
                      sin, cos):
    B, P, D = qx.shape
    H, _, Dh = W_Q.shape

    def lin(x, W, b):
        return jnp.einsum('bpd,hdm->bphm', x, W) + b

    def rope(x):  # [B, P, H, Dh]
        n = ROTARY_DIM // 2
        x_rot = x[..., :ROTARY_DIM]
        x_pass = x[..., ROTARY_DIM:]
        flip = jnp.concatenate([-x_rot[..., n:], x_rot[..., :n]], axis=-1)
        rot = x_rot * cos[None, :, None, :] + flip * sin[None, :, None, :]
        return jnp.concatenate([rot, x_pass], axis=-1)

    q = rope(lin(qx, W_Q, b_Q))
    k = rope(lin(kx, W_K, b_K))
    v = lin(vx, W_V, b_V)

    scores = jnp.einsum('bqhd,bkhd->bhqk', q, k) / ATTN_SCALE
    causal = jnp.tril(jnp.ones((P, P), dtype=bool))
    scores = jnp.where(causal[None, None], scores, -jnp.inf)
    pattern = jax.nn.softmax(scores, axis=-1)
    pattern = jnp.where(jnp.isnan(pattern), jnp.zeros_like(pattern), pattern)
    z = jnp.einsum('bhqk,bkhd->bqhd', pattern, v)
    out = z.reshape(B, P, H * Dh) @ W_O.reshape(H * Dh, D) + b_O
    return out


if __name__ == "__main__":
    key = jax.random.PRNGKey(0)
    ks = jax.random.split(key, 10)

    qx = jax.random.normal(ks[0], (BATCH, N_CTX, D_MODEL), DTYPE)
    kx = jax.random.normal(ks[1], (BATCH, N_CTX, D_MODEL), DTYPE)
    vx = jax.random.normal(ks[2], (BATCH, N_CTX, D_MODEL), DTYPE)

    W_Q = 0.02 * jax.random.normal(ks[3], (N_HEADS, D_MODEL, D_HEAD), DTYPE)
    W_K = 0.02 * jax.random.normal(ks[4], (N_HEADS, D_MODEL, D_HEAD), DTYPE)
    W_V = 0.02 * jax.random.normal(ks[5], (N_HEADS, D_MODEL, D_HEAD), DTYPE)
    W_O = 0.02 * jax.random.normal(ks[6], (N_HEADS, D_HEAD, D_MODEL), DTYPE)
    b_Q = 0.01 * jax.random.normal(ks[7], (N_HEADS, D_HEAD), DTYPE)
    b_K = 0.01 * jax.random.normal(ks[8], (N_HEADS, D_HEAD), DTYPE)
    b_V = 0.01 * jax.random.normal(ks[9], (N_HEADS, D_HEAD), DTYPE)
    b_O = jnp.zeros((D_MODEL,), DTYPE)

    sin, cos = calculate_sin_cos_rotary(ROTARY_DIM, N_CTX, ROTARY_BASE, DTYPE)

    out = attention_forward(qx, kx, vx, W_Q, W_K, W_V, W_O,
                            b_Q, b_K, b_V, b_O, sin, cos)
    out = jax.block_until_ready(out)

    ref = reference_forward(qx, kx, vx, W_Q, W_K, W_V, W_O,
                            b_Q, b_K, b_V, b_O, sin, cos)
    assert out.shape == (BATCH, N_CTX, D_MODEL)
    # tolerance relaxed slightly (approx EUP reciprocal + TPU matmul rounding)
    assert jnp.allclose(out, ref, atol=2e-3, rtol=2e-3), "mismatch vs reference"

    print("KERNEL_OK")
</pallas_src>

<mosaic_0001>
module attributes {stable_mosaic.version = 11 : i64} {
  func.func @attention_kernel(%arg0: i32, %arg1: memref<1x24x32xf32, #tpu.memory_space<vmem>>, %arg2: memref<32x160xf32, #tpu.memory_space<vmem>>, %arg3: memref<1x160xf32, #tpu.memory_space<vmem>>, %arg4: memref<2x8x32xf32, #tpu.memory_space<vmem>>, %arg5: memref<8x8xf32, #tpu.memory_space<vmem>>, %arg6: memref<32x128xf32, #tpu.memory_space<vmem>>, %arg7: memref<1x128xf32, #tpu.memory_space<vmem>>, %arg8: memref<1x8x128xf32, #tpu.memory_space<vmem>>) attributes {dimension_semantics = [#tpu.dimension_semantics<parallel>], iteration_bounds = array<i64: 2>, scalar_prefetch = 0 : i64, scratch_operands = 0 : i64, tpu.core_type = #tpu.core_type<tc>, window_params = [{transform_indices = @transform_0, window_bounds = array<i64: 1, 24, 32>}, {pipeline_mode = #tpu.pipeline_mode<synchronous>, transform_indices = @transform_1, window_bounds = array<i64: 32, 160>}, {pipeline_mode = #tpu.pipeline_mode<synchronous>, transform_indices = @transform_2, window_bounds = array<i64: 1, 160>}, {pipeline_mode = #tpu.pipeline_mode<synchronous>, transform_indices = @transform_3, window_bounds = array<i64: 2, 8, 32>}, {pipeline_mode = #tpu.pipeline_mode<synchronous>, transform_indices = @transform_4, window_bounds = array<i64: 8, 8>}, {pipeline_mode = #tpu.pipeline_mode<synchronous>, transform_indices = @transform_5, window_bounds = array<i64: 32, 128>}, {pipeline_mode = #tpu.pipeline_mode<synchronous>, transform_indices = @transform_6, window_bounds = array<i64: 1, 128>}, {transform_indices = @transform_7, window_bounds = array<i64: 1, 8, 128>}]} {
    %c0 = arith.constant 0 : index
    %c0_0 = arith.constant 0 : index
    %c0_1 = arith.constant 0 : index
    %0 = vector.load %arg1[%c0, %c0_0, %c0_1] : memref<1x24x32xf32, #tpu.memory_space<vmem>>, vector<1x24x32xf32>
    %1 = vector.shape_cast %0 : vector<1x24x32xf32> to vector<24x32xf32>
    %c0_2 = arith.constant 0 : index
    %c0_3 = arith.constant 0 : index
    %2 = vector.load %arg2[%c0_2, %c0_3] : memref<32x160xf32, #tpu.memory_space<vmem>>, vector<32x160xf32>
    %cst = arith.constant dense<0.000000e+00> : vector<24x160xf32>
    %3 = tpu.matmul %1, %2, %cst {dimension_numbers = #tpu.dot_dimension_numbers<[1], [0], [0], [1], [0, 0, 1, 1], [], []>} : vector<24x32xf32>, vector<32x160xf32>, vector<24x160xf32> -> vector<24x160xf32>
    %c0_4 = arith.constant 0 : index
    %c0_5 = arith.constant 0 : index
    %4 = vector.load %arg3[%c0_4, %c0_5] : memref<1x160xf32, #tpu.memory_space<vmem>>, vector<1x160xf32>
    %5 = vector.broadcast %4 : vector<1x160xf32> to vector<24x160xf32>
    %6 = arith.addf %3, %5 : vector<24x160xf32>
    %7 = vector.extract_strided_slice %6 {offsets = [0, 0], sizes = [8, 32], strides = [1, 1]} : vector<24x160xf32> to vector<8x32xf32>
    %8 = vector.extract_strided_slice %6 {offsets = [8, 32], sizes = [8, 32], strides = [1, 1]} : vector<24x160xf32> to vector<8x32xf32>
    %9 = vector.extract_strided_slice %6 {offsets = [16, 64], sizes = [8, 32], strides = [1, 1]} : vector<24x160xf32> to vector<8x32xf32>
    %10 = vector.extract_strided_slice %6 {offsets = [0, 96], sizes = [8, 32], strides = [1, 1]} : vector<24x160xf32> to vector<8x32xf32>
    %11 = vector.extract_strided_slice %6 {offsets = [8, 128], sizes = [8, 32], strides = [1, 1]} : vector<24x160xf32> to vector<8x32xf32>
    %c0_6 = arith.constant 0 : index
    %c0_7 = arith.constant 0 : index
    %c0_8 = arith.constant 0 : index
    %12 = vector.load %arg4[%c0_6, %c0_7, %c0_8] : memref<2x8x32xf32, #tpu.memory_space<vmem>>, vector<1x8x32xf32>
    %13 = vector.shape_cast %12 : vector<1x8x32xf32> to vector<8x32xf32>
    %c1 = arith.constant 1 : index
    %c0_9 = arith.constant 0 : index
    %c0_10 = arith.constant 0 : index
    %14 = vector.load %arg4[%c1, %c0_9, %c0_10] : memref<2x8x32xf32, #tpu.memory_space<vmem>>, vector<1x8x32xf32>
    %15 = vector.shape_cast %14 : vector<1x8x32xf32> to vector<8x32xf32>
    %16 = arith.mulf %7, %13 : vector<8x32xf32>
    %17 = arith.mulf %10, %15 : vector<8x32xf32>
    %18 = arith.addf %16, %17 : vector<8x32xf32>
    %19 = arith.mulf %8, %13 : vector<8x32xf32>
    %20 = arith.mulf %11, %15 : vector<8x32xf32>
    %21 = arith.addf %19, %20 : vector<8x32xf32>
    %22 = vector.extract_strided_slice %18 {offsets = [0, 0], sizes = [8, 8], strides = [1, 1]} : vector<8x32xf32> to vector<8x8xf32>
    %23 = vector.shape_cast %22 : vector<8x8xf32> to vector<1x8x8xf32>
    %24 = vector.extract_strided_slice %18 {offsets = [0, 8], sizes = [8, 8], strides = [1, 1]} : vector<8x32xf32> to vector<8x8xf32>
    %25 = vector.shape_cast %24 : vector<8x8xf32> to vector<1x8x8xf32>
    %26 = vector.extract_strided_slice %18 {offsets = [0, 16], sizes = [8, 8], strides = [1, 1]} : vector<8x32xf32> to vector<8x8xf32>
    %27 = vector.shape_cast %26 : vector<8x8xf32> to vector<1x8x8xf32>
    %28 = vector.extract_strided_slice %18 {offsets = [0, 24], sizes = [8, 8], strides = [1, 1]} : vector<8x32xf32> to vector<8x8xf32>
    %29 = vector.shape_cast %28 : vector<8x8xf32> to vector<1x8x8xf32>
    %30 = tpu.concatenate %23, %25, %27, %29 in 0 : vector<1x8x8xf32>, vector<1x8x8xf32>, vector<1x8x8xf32>, vector<1x8x8xf32> -> vector<4x8x8xf32>
    %31 = vector.extract_strided_slice %21 {offsets = [0, 0], sizes = [8, 8], strides = [1, 1]} : vector<8x32xf32> to vector<8x8xf32>
    %32 = vector.shape_cast %31 : vector<8x8xf32> to vector<1x8x8xf32>
    %33 = vector.extract_strided_slice %21 {offsets = [0, 8], sizes = [8, 8], strides = [1, 1]} : vector<8x32xf32> to vector<8x8xf32>
    %34 = vector.shape_cast %33 : vector<8x8xf32> to vector<1x8x8xf32>
    %35 = vector.extract_strided_slice %21 {offsets = [0, 16], sizes = [8, 8], strides = [1, 1]} : vector<8x32xf32> to vector<8x8xf32>
    %36 = vector.shape_cast %35 : vector<8x8xf32> to vector<1x8x8xf32>
    %37 = vector.extract_strided_slice %21 {offsets = [0, 24], sizes = [8, 8], strides = [1, 1]} : vector<8x32xf32> to vector<8x8xf32>
    %38 = vector.shape_cast %37 : vector<8x8xf32> to vector<1x8x8xf32>
    %39 = tpu.concatenate %32, %34, %36, %38 in 0 : vector<1x8x8xf32>, vector<1x8x8xf32>, vector<1x8x8xf32>, vector<1x8x8xf32> -> vector<4x8x8xf32>
    %40 = vector.extract_strided_slice %9 {offsets = [0, 0], sizes = [8, 8], strides = [1, 1]} : vector<8x32xf32> to vector<8x8xf32>
    %41 = vector.shape_cast %40 : vector<8x8xf32> to vector<1x8x8xf32>
    %42 = vector.extract_strided_slice %9 {offsets = [0, 8], sizes = [8, 8], strides = [1, 1]} : vector<8x32xf32> to vector<8x8xf32>
    %43 = vector.shape_cast %42 : vector<8x8xf32> to vector<1x8x8xf32>
    %44 = vector.extract_strided_slice %9 {offsets = [0, 16], sizes = [8, 8], strides = [1, 1]} : vector<8x32xf32> to vector<8x8xf32>
    %45 = vector.shape_cast %44 : vector<8x8xf32> to vector<1x8x8xf32>
    %46 = vector.extract_strided_slice %9 {offsets = [0, 24], sizes = [8, 8], strides = [1, 1]} : vector<8x32xf32> to vector<8x8xf32>
    %47 = vector.shape_cast %46 : vector<8x8xf32> to vector<1x8x8xf32>
    %48 = tpu.concatenate %41, %43, %45, %47 in 0 : vector<1x8x8xf32>, vector<1x8x8xf32>, vector<1x8x8xf32>, vector<1x8x8xf32> -> vector<4x8x8xf32>
    "tpu.trace_start"() <{level = 10 : i32, message = "htd,hsd->hts"}> : () -> ()
    %cst_11 = arith.constant dense<0.000000e+00> : vector<4x8x8xf32>
    %49 = tpu.matmul %30, %39, %cst_11 {dimension_numbers = #tpu.dot_dimension_numbers<[2], [2], [1], [1], [0, 0, 0, 1, 1, 1], [0], [0]>} : vector<4x8x8xf32>, vector<4x8x8xf32>, vector<4x8x8xf32> -> vector<4x8x8xf32>
    "tpu.trace_stop"() : () -> ()
    %c0_12 = arith.constant 0 : index
    %c0_13 = arith.constant 0 : index
    %50 = vector.load %arg5[%c0_12, %c0_13] : memref<8x8xf32, #tpu.memory_space<vmem>>, vector<8x8xf32>
    %51 = vector.shape_cast %50 : vector<8x8xf32> to vector<1x8x8xf32>
    %52 = vector.broadcast %51 : vector<1x8x8xf32> to vector<4x8x8xf32>
    %53 = arith.addf %49, %52 : vector<4x8x8xf32>
    %cst_14 = arith.constant dense<0xFF800000> : vector<4x8xf32>
    %54 = vector.multi_reduction <maximumf>, %53, %cst_14 [2] : vector<4x8x8xf32> to vector<4x8xf32>
    %55 = vector.shape_cast %54 : vector<4x8xf32> to vector<4x8x1xf32>
    %56 = vector.broadcast %55 : vector<4x8x1xf32> to vector<4x8x8xf32>
    %57 = arith.subf %53, %56 : vector<4x8x8xf32>
    %58 = math.exp %57 : vector<4x8x8xf32>
    %cst_15 = arith.constant dense<0.000000e+00> : vector<4x8xf32>
    %59 = vector.multi_reduction <add>, %58, %cst_15 [2] : vector<4x8x8xf32> to vector<4x8xf32>
    %60 = vector.shape_cast %59 : vector<4x8xf32> to vector<4x8x1xf32>
    "tpu.trace_start"() <{level = 10 : i32, message = "hts,hsd->htd"}> : () -> ()
    %cst_16 = arith.constant dense<0.000000e+00> : vector<4x8x8xf32>
    %61 = tpu.matmul %58, %48, %cst_16 {dimension_numbers = #tpu.dot_dimension_numbers<[2], [1], [1], [2], [0, 0, 0, 1, 1, 2], [0], [0]>} : vector<4x8x8xf32>, vector<4x8x8xf32>, vector<4x8x8xf32> -> vector<4x8x8xf32>
    "tpu.trace_stop"() : () -> ()
    %62 = tpu.reciprocal %60 {approx = true} : vector<4x8x1xf32> -> vector<4x8x1xf32>
    %63 = vector.broadcast %62 : vector<4x8x1xf32> to vector<4x8x8xf32>
    %64 = arith.mulf %61, %63 : vector<4x8x8xf32>
    %65 = vector.extract_strided_slice %64 {offsets = [0, 0, 0], sizes = [1, 8, 8], strides = [1, 1, 1]} : vector<4x8x8xf32> to vector<1x8x8xf32>
    %66 = vector.shape_cast %65 : vector<1x8x8xf32> to vector<8x8xf32>
    %67 = vector.extract_strided_slice %64 {offsets = [1, 0, 0], sizes = [1, 8, 8], strides = [1, 1, 1]} : vector<4x8x8xf32> to vector<1x8x8xf32>
    %68 = vector.shape_cast %67 : vector<1x8x8xf32> to vector<8x8xf32>
    %69 = vector.extract_strided_slice %64 {offsets = [2, 0, 0], sizes = [1, 8, 8], strides = [1, 1, 1]} : vector<4x8x8xf32> to vector<1x8x8xf32>
    %70 = vector.shape_cast %69 : vector<1x8x8xf32> to vector<8x8xf32>
    %71 = vector.extract_strided_slice %64 {offsets = [3, 0, 0], sizes = [1, 8, 8], strides = [1, 1, 1]} : vector<4x8x8xf32> to vector<1x8x8xf32>
    %72 = vector.shape_cast %71 : vector<1x8x8xf32> to vector<8x8xf32>
    %73 = tpu.concatenate %66, %68, %70, %72 in 1 : vector<8x8xf32>, vector<8x8xf32>, vector<8x8xf32>, vector<8x8xf32> -> vector<8x32xf32>
    %c0_17 = arith.constant 0 : index
    %c0_18 = arith.constant 0 : index
    %74 = vector.load %arg6[%c0_17, %c0_18] : memref<32x128xf32, #tpu.memory_space<vmem>>, vector<32x128xf32>
    %cst_19 = arith.constant dense<0.000000e+00> : vector<8x128xf32>
    %75 = tpu.matmul %73, %74, %cst_19 {dimension_numbers = #tpu.dot_dimension_numbers<[1], [0], [0], [1], [0, 0, 1, 1], [], []>} : vector<8x32xf32>, vector<32x128xf32>, vector<8x128xf32> -> vector<8x128xf32>
    %c0_20 = arith.constant 0 : index
    %c0_21 = arith.constant 0 : index
    %76 = vector.load %arg7[%c0_20, %c0_21] : memref<1x128xf32, #tpu.memory_space<vmem>>, vector<1x128xf32>
    %77 = vector.broadcast %76 : vector<1x128xf32> to vector<8x128xf32>
    %78 = arith.addf %75, %77 : vector<8x128xf32>
    %c0_22 = arith.constant 0 : index
    %c0_23 = arith.constant 0 : index
    %c0_24 = arith.constant 0 : index
    %79 = vector.load %arg8[%c0_22, %c0_23, %c0_24] : memref<1x8x128xf32, #tpu.memory_space<vmem>>, vector<1x8x128xf32>
    %80 = vector.shape_cast %79 : vector<1x8x128xf32> to vector<8x128xf32>
    %81 = vector.shape_cast %78 : vector<8x128xf32> to vector<1x8x128xf32>
    tpu.vector_store %arg8[%c0_22, %c0_23, %c0_24], %81 {strides = array<i32>} : memref<1x8x128xf32, #tpu.memory_space<vmem>>, vector<1x8x128xf32>,
    return
  }
  func.func @transform_0(%arg0: i32) -> (i32, i32, i32) {
    %c0_i32 = arith.constant 0 : i32
    %c0_i32_0 = arith.constant 0 : i32
    %c0_i32_1 = arith.constant 0 : i32
    return %arg0, %c0_i32, %c0_i32_0 : i32, i32, i32
  }
  func.func @transform_1(%arg0: i32) -> (i32, i32) {
    %c0_i32 = arith.constant 0 : i32
    %c0_i32_0 = arith.constant 0 : i32
    %c0_i32_1 = arith.constant 0 : i32
    return %c0_i32, %c0_i32_0 : i32, i32
  }
  func.func @transform_2(%arg0: i32) -> (i32, i32) {
    %c0_i32 = arith.constant 0 : i32
    %c0_i32_0 = arith.constant 0 : i32
    %c0_i32_1 = arith.constant 0 : i32
    return %c0_i32, %c0_i32_0 : i32, i32
  }
  func.func @transform_3(%arg0: i32) -> (i32, i32, i32) {
    %c0_i32 = arith.constant 0 : i32
    %c0_i32_0 = arith.constant 0 : i32
    %c0_i32_1 = arith.constant 0 : i32
    %c0_i32_2 = arith.constant 0 : i32
    return %c0_i32, %c0_i32_0, %c0_i32_1 : i32, i32, i32
  }
  func.func @transform_4(%arg0: i32) -> (i32, i32) {
    %c0_i32 = arith.constant 0 : i32
    %c0_i32_0 = arith.constant 0 : i32
    %c0_i32_1 = arith.constant 0 : i32
    return %c0_i32, %c0_i32_0 : i32, i32
  }
  func.func @transform_5(%arg0: i32) -> (i32, i32) {
    %c0_i32 = arith.constant 0 : i32
    %c0_i32_0 = arith.constant 0 : i32
    %c0_i32_1 = arith.constant 0 : i32
    return %c0_i32, %c0_i32_0 : i32, i32
  }
  func.func @transform_6(%arg0: i32) -> (i32, i32) {
    %c0_i32 = arith.constant 0 : i32
    %c0_i32_0 = arith.constant 0 : i32
    %c0_i32_1 = arith.constant 0 : i32
    return %c0_i32, %c0_i32_0 : i32, i32
  }
  func.func @transform_7(%arg0: i32) -> (i32, i32, i32) {
    %c0_i32 = arith.constant 0 : i32
    %c0_i32_0 = arith.constant 0 : i32
    %c0_i32_1 = arith.constant 0 : i32
    return %arg0, %c0_i32, %c0_i32_0 : i32, i32, i32
  }
}

</mosaic_0001>

<llo_original>
// kernel: attention_forward.1
$region0: #{attention_forward.1}
  #allocation0 [shape = 'u32[]', space=smem, size = 0x4, offset = 0x4, fixed_abs, tag = 'smem constant byte address 0x4 - core index']
  #allocation1 [shape = 'u32[72,128]{1,0:T(1,128)}', space=vmem, size = 0x9000, scoped, tag = 'internal scratch']
  %s0 = inlined_call_operand.vmem [shape: f32[2,24,32], index: 0, kind: input, shape index: {}]
  %s1 = inlined_call_operand.vmem [shape: f32[32,160], index: 1, kind: input, shape index: {}]
  %s2 = inlined_call_operand.vmem [shape: f32[1,160], index: 2, kind: input, shape index: {}]
  %s3 = inlined_call_operand.vmem [shape: f32[2,8,32], index: 3, kind: input, shape index: {}]
  %s4 = inlined_call_operand.vmem [shape: f32[8,8], index: 4, kind: input, shape index: {}]
  %s5 = inlined_call_operand.vmem [shape: f32[32,128], index: 5, kind: input, shape index: {}]
  %s6 = inlined_call_operand.vmem [shape: f32[1,128], index: 6, kind: input, shape index: {}]
  %s7 = inlined_call_operand.hbm [shape: f32[2,8,128], index: 7, kind: output, shape index: {}]
  %s8 = sld [smem:[#allocation0]]
  $region61: #{attention_forward.1} parent=0
    _
  %s10 = ssub.s32 1, %s8
  %s11 = scalar_select 0, %s10, %s8
  $region1: #{attention_forward.1} parent=0
    #allocation2 [shape = 'u8[8192]{0}', space=vmem, size = 0x2000, scoped, tag = 'output window, operand 0']
    #allocation3 [shape = 's32[2]{0}', space=sflag, size = 0x8, scoped, tag = 'scoped memory for attention_forward.1']
    %12 = vsyncpa [#allocation3], 0
    %s13 = scalar_lea.sflag [#allocation3], 1
    %14 = vsyncpa %s13, 0
    loop: start=0, step=1, limit=4
    $region2: #{attention_forward.1} parent=1 // loop_pre_header
      _
    $region3: #{attention_forward.1} parent=1 // loop_header
      %s16 = sphi 0, %s20
      %p17 = scmp.ge.s32.totalorder %s16, 4
      %s26 = sphi 0, %s28
      %s29 = sphi 0, %s26
      %s30 = sphi 0, %s29
      %s46 = sphi 0, %s30
      %s50 = sphi 0, %s50
      %s52 = sphi 0, %s50
      %s53 = sphi 0, %s52
      %s67 = sphi 0, %s53
      %s71 = sphi 0, %s71
      %s73 = sphi 0, %s71
      %s74 = sphi 0, %s73
      %s88 = sphi 0, %s74
      %s92 = sphi 0, %s92
      %s94 = sphi 0, %s92
      %s95 = sphi 0, %s94
      %s109 = sphi 0, %s95
      %s113 = sphi 0, %s113
      %s115 = sphi 0, %s113
      %s116 = sphi 0, %s115
      %s130 = sphi 0, %s116
      %s134 = sphi 0, %s134
      %s136 = sphi 0, %s134
      %s137 = sphi 0, %s136
      %s151 = sphi 0, %s137
      %s155 = sphi 0, %s155
      %s157 = sphi 0, %s155
      %s158 = sphi 0, %s157
      %s172 = sphi 0, %s158
      %s178 = sphi 0, %s180
      %s181 = sphi 0, %s178
      %s182 = sphi 0, %s181
      %s198 = sphi 0, %s182
    $region4: #{attention_forward.1} parent=1 // loop_header_branch
      %19 = sbr.rel (%p17) target = $region8
    $region5: #{attention_forward.1} parent=1 // loop_body
      %s21 = ssub.s32 %s16, 1
      %s22 = ssub.s32 %s16, 2
      %s23 = sadd.s32 %s16, 1
      %s24 = ssub.s32 %s16, %s23
      %p25 = scmp.eq.s32.totalorder %s24, 0
      %s27 = sadd.s32 %s26, 1
      %s28 = scalar_select %p25, %s26, %s27
      %p31 = pneg %p25
      %p32 = scmp.eq.s32.totalorder %s16, 1
      %p33 = por %p31, %p32
      %p34 = scmp.ne.s32.totalorder %s26, %s29
      %p35 = scmp.eq.s32.totalorder %s16, 0
      %p36 = por %p34, %p35
      %p37 = scmp.ne.s32.totalorder %s26, %s29
      %p38 = scmp.eq.s32.totalorder %s21, 1
      %p39 = por %p37, %p38
      %p40 = scmp.ne.s32.totalorder %s29, %s30
      %p41 = scmp.eq.s32.totalorder %s21, 0
      %p42 = por %p40, %p41
      %p43 = scmp.ne.s32.totalorder %s29, %s30
      %p44 = scmp.eq.s32.totalorder %s22, 1
      %p45 = por %p43, %p44
      %p47 = scmp.ne.s32.totalorder %s30, %s46
      %p48 = scmp.eq.s32.totalorder %s22, 0
      %p49 = por %p47, %p48
      %s51 = sadd.s32 %s50, 1
      %p54 = scmp.eq.s32.totalorder %s16, 1
      %p55 = scmp.ne.s32.totalorder %s50, %s52
      %p56 = scmp.eq.s32.totalorder %s16, 0
      %p57 = por %p55, %p56
      %p58 = scmp.ne.s32.totalorder %s50, %s52
      %p59 = scmp.eq.s32.totalorder %s21, 1
      %p60 = por %p58, %p59
      %p61 = scmp.ne.s32.totalorder %s52, %s53
      %p62 = scmp.eq.s32.totalorder %s21, 0
      %p63 = por %p61, %p62
      %p64 = scmp.ne.s32.totalorder %s52, %s53
      %p65 = scmp.eq.s32.totalorder %s22, 1
      %p66 = por %p64, %p65
      %p68 = scmp.ne.s32.totalorder %s53, %s67
      %p69 = scmp.eq.s32.totalorder %s22, 0
      %p70 = por %p68, %p69
      %s72 = sadd.s32 %s71, 1
      %p75 = scmp.eq.s32.totalorder %s16, 1
      %p76 = scmp.ne.s32.totalorder %s71, %s73
      %p77 = scmp.eq.s32.totalorder %s16, 0
      %p78 = por %p76, %p77
      %p79 = scmp.ne.s32.totalorder %s71, %s73
      %p80 = scmp.eq.s32.totalorder %s21, 1
      %p81 = por %p79, %p80
      %p82 = scmp.ne.s32.totalorder %s73, %s74
      %p83 = scmp.eq.s32.totalorder %s21, 0
      %p84 = por %p82, %p83
      %p85 = scmp.ne.s32.totalorder %s73, %s74
      %p86 = scmp.eq.s32.totalorder %s22, 1
      %p87 = por %p85, %p86
      %p89 = scmp.ne.s32.totalorder %s74, %s88
      %p90 = scmp.eq.s32.totalorder %s22, 0
      %p91 = por %p89, %p90
      %s93 = sadd.s32 %s92, 1
      %p96 = scmp.eq.s32.totalorder %s16, 1
      %p97 = scmp.ne.s32.totalorder %s92, %s94
      %p98 = scmp.eq.s32.totalorder %s16, 0
      %p99 = por %p97, %p98
      %p100 = scmp.ne.s32.totalorder %s92, %s94
      %p101 = scmp.eq.s32.totalorder %s21, 1
      %p102 = por %p100, %p101
      %p103 = scmp.ne.s32.totalorder %s94, %s95
      %p104 = scmp.eq.s32.totalorder %s21, 0
      %p105 = por %p103, %p104
      %p106 = scmp.ne.s32.totalorder %s94, %s95
      %p107 = scmp.eq.s32.totalorder %s22, 1
      %p108 = por %p106, %p107
      %p110 = scmp.ne.s32.totalorder %s95, %s109
      %p111 = scmp.eq.s32.totalorder %s22, 0
      %p112 = por %p110, %p111
      %s114 = sadd.s32 %s113, 1
      %p117 = scmp.eq.s32.totalorder %s16, 1
      %p118 = scmp.ne.s32.totalorder %s113, %s115
      %p119 = scmp.eq.s32.totalorder %s16, 0
      %p120 = por %p118, %p119
      %p121 = scmp.ne.s32.totalorder %s113, %s115
      %p122 = scmp.eq.s32.totalorder %s21, 1
      %p123 = por %p121, %p122
      %p124 = scmp.ne.s32.totalorder %s115, %s116
      %p125 = scmp.eq.s32.totalorder %s21, 0
      %p126 = por %p124, %p125
      %p127 = scmp.ne.s32.totalorder %s115, %s116
      %p128 = scmp.eq.s32.totalorder %s22, 1
      %p129 = por %p127, %p128
      %p131 = scmp.ne.s32.totalorder %s116, %s130
      %p132 = scmp.eq.s32.totalorder %s22, 0
      %p133 = por %p131, %p132
      %s135 = sadd.s32 %s134, 1
      %p138 = scmp.eq.s32.totalorder %s16, 1
      %p139 = scmp.ne.s32.totalorder %s134, %s136
      %p140 = scmp.eq.s32.totalorder %s16, 0
      %p141 = por %p139, %p140
      %p142 = scmp.ne.s32.totalorder %s134, %s136
      %p143 = scmp.eq.s32.totalorder %s21, 1
      %p144 = por %p142, %p143
      %p145 = scmp.ne.s32.totalorder %s136, %s137
      %p146 = scmp.eq.s32.totalorder %s21, 0
      %p147 = por %p145, %p146
      %p148 = scmp.ne.s32.totalorder %s136, %s137
      %p149 = scmp.eq.s32.totalorder %s22, 1
      %p150 = por %p148, %p149
      %p152 = scmp.ne.s32.totalorder %s137, %s151
      %p153 = scmp.eq.s32.totalorder %s22, 0
      %p154 = por %p152, %p153
      %s156 = sadd.s32 %s155, 1
      %p159 = scmp.eq.s32.totalorder %s16, 1
      %p160 = scmp.ne.s32.totalorder %s155, %s157
      %p161 = scmp.eq.s32.totalorder %s16, 0
      %p162 = por %p160, %p161
      %p163 = scmp.ne.s32.totalorder %s155, %s157
      %p164 = scmp.eq.s32.totalorder %s21, 1
      %p165 = por %p163, %p164
      %p166 = scmp.ne.s32.totalorder %s157, %s158
      %p167 = scmp.eq.s32.totalorder %s21, 0
      %p168 = por %p166, %p167
      %p169 = scmp.ne.s32.totalorder %s157, %s158
      %p170 = scmp.eq.s32.totalorder %s22, 1
      %p171 = por %p169, %p170
      %p173 = scmp.ne.s32.totalorder %s158, %s172
      %p174 = scmp.eq.s32.totalorder %s22, 0
      %p175 = por %p173, %p174
      %s176 = ssub.s32 %s16, %s23
      %p177 = scmp.eq.s32.totalorder %s176, 0
      %s179 = sadd.s32 %s178, 1
      %s180 = scalar_select %p177, %s178, %s179
      %p183 = pneg %p177
      %p184 = scmp.eq.s32.totalorder %s16, 1
      %p185 = por %p183, %p184
      %p186 = scmp.ne.s32.totalorder %s178, %s181
      %p187 = scmp.eq.s32.totalorder %s16, 0
      %p188 = por %p186, %p187
      %p189 = scmp.ne.s32.totalorder %s178, %s181
      %p190 = scmp.eq.s32.totalorder %s21, 1
      %p191 = por %p189, %p190
      %p192 = scmp.ne.s32.totalorder %s181, %s182
      %p193 = scmp.eq.s32.totalorder %s21, 0
      %p194 = por %p192, %p193
      %p195 = scmp.ne.s32.totalorder %s181, %s182
      %p196 = scmp.eq.s32.totalorder %s22, 1
      %p197 = por %p195, %p196
      %p199 = scmp.ne.s32.totalorder %s182, %s198
      %p200 = scmp.eq.s32.totalorder %s22, 0
      %p201 = por %p199, %p200
      %p202 = scmp.le.s32.totalorder 1, %s16
      %p203 = scmp.lt.s32.totalorder %s16, 3
      %p204 = pnand %p202, %p203
      %p205 = pneg %p204
      // Predicated region
      $region9: #{attention_forward.1} parent=5 // pred_check
        _
      $region10: #{attention_forward.1} parent=5 // pred_check_branch
        %207 = sbr.rel (%p204) target = $region12
      $region11: #{attention_forward.1} parent=5 // pred_region
        %s208 = ssub.s32 %s16, 1
        // Predicated region
        $region13: #{attention_forward.1} parent=11 // pred_check
          %p209 = pneg %p63
        $region14: #{attention_forward.1} parent=11 // pred_check_branch
          %211 = sbr.rel (%p209) target = $region16
        $region15: #{attention_forward.1} parent=11 // pred_region
          _
        $region16: #{attention_forward.1} parent=11 // pred_fallthru
          _
        // Predicated region
        $region17: #{attention_forward.1} parent=11 // pred_check
          %p212 = pneg %p84
        $region18: #{attention_forward.1} parent=11 // pred_check_branch
          %214 = sbr.rel (%p212) target = $region20
        $region19: #{attention_forward.1} parent=11 // pred_region
          _
        $region20: #{attention_forward.1} parent=11 // pred_fallthru
          _
        // Predicated region
        $region21: #{attention_forward.1} parent=11 // pred_check
          %p215 = pneg %p105
        $region22: #{attention_forward.1} parent=11 // pred_check_branch
          %217 = sbr.rel (%p215) target = $region24
        $region23: #{attention_forward.1} parent=11 // pred_region
          _
        $region24: #{attention_forward.1} parent=11 // pred_fallthru
          _
        // Predicated region
        $region25: #{attention_forward.1} parent=11 // pred_check
          %p218 = pneg %p126
        $region26: #{attention_forward.1} parent=11 // pred_check_branch
          %220 = sbr.rel (%p218) target = $region28
        $region27: #{attention_forward.1} parent=11 // pred_region
          _
        $region28: #{attention_forward.1} parent=11 // pred_fallthru
          _
        // Predicated region
        $region29: #{attention_forward.1} parent=11 // pred_check
          %p221 = pneg %p147
        $region30: #{attention_forward.1} parent=11 // pred_check_branch
          %223 = sbr.rel (%p221) target = $region32
        $region31: #{attention_forward.1} parent=11 // pred_region
          _
        $region32: #{attention_forward.1} parent=11 // pred_fallthru
          _
        // Predicated region
        $region33: #{attention_forward.1} parent=11 // pred_check
          %p224 = pneg %p168
        $region34: #{attention_forward.1} parent=11 // pred_check_branch
          %226 = sbr.rel (%p224) target = $region36
        $region35: #{attention_forward.1} parent=11 // pred_region
          _
        $region36: #{attention_forward.1} parent=11 // pred_fallthru
          _
      $region12: #{attention_forward.1} parent=5 // pred_fallthru
        _
      %p227 = scmp.lt.s32.totalorder %s16, 2
      // Predicated region
      $region37: #{attention_forward.1} parent=5 // pred_check
        %p228 = pneg %p227
      $region38: #{attention_forward.1} parent=5 // pred_check_branch
        %230 = sbr.rel (%p228) target = $region40
      $region39: #{attention_forward.1} parent=5 // pred_region
        // Predicated region
        $region41: #{attention_forward.1} parent=39 // pred_check
          %p231 = pneg %p36
        $region42: #{attention_forward.1} parent=39 // pred_check_branch
          %233 = sbr.rel (%p231) target = $region44
        $region43: #{attention_forward.1} parent=39 // pred_region
          %p234 = scmp.lt.s32.totalorder %s16, 1
          %s235 = scalar_select %p234, %s16, 1
          %s236 = smul.addr %s235, 3
          %s237 = smul.addr %s236, 8
          %s238 = scalar_lea.vmem %s0, %s237
        $region44: #{attention_forward.1} parent=39 // pred_fallthru
          _
      $region40: #{attention_forward.1} parent=5 // pred_fallthru
        _
      %p239 = scmp.le.s32.totalorder 1, %s16
      %p240 = scmp.lt.s32.totalorder %s16, 3
      %p241 = pnand %p239, %p240
      %p242 = pneg %p241
      // Predicated region
      $region45: #{attention_forward.1} parent=5 // pred_check
        _
      $region46: #{attention_forward.1} parent=5 // pred_check_branch
        %244 = sbr.rel (%p241) target = $region48
      $region47: #{attention_forward.1} parent=5 // pred_region
        %s245 = ssub.s32 %s16, 1
        %p246 = scmp.lt.s32.totalorder %s21, 1
        %s247 = scalar_select %p246, %s21, 1
        %s248 = smul.addr %s247, 3
        %s249 = smul.addr %s248, 8
        %s250 = scalar_lea.vmem %s0, %s249
        %p251 = pneg %p42
        %p252 = pneg %p39
        %p253 = pneg %p63
        %p254 = pneg %p60
        %p255 = pneg %p84
        %p256 = pneg %p81
        %p257 = pneg %p105
        %p258 = pneg %p102
        %p259 = pneg %p126
        %p260 = pneg %p123
        %p261 = pneg %p147
        %p262 = pneg %p144
        %p263 = pneg %p168
        %p264 = pneg %p165
        %p265 = pneg %p194
        %p266 = pneg %p191
        %s267 = sand.u32 %s181, 1
        %s268 = scalar_lea.sflag [#allocation3], %s267
        %s269 = sand.u32 %s181, 1
        %s270 = smul.addr %s269, 8
        %s271 = scalar_lea.vmem [#allocation2], %s270
        %p272 = scmp.lt.s32.totalorder %s21, 1
        %s273 = scalar_select %p272, %s21, 1
        %s274 = smul.addr %s273, 3
        %s275 = smul.addr %s274, 8
        %s276 = scalar_lea.vmem %s0, %s275
        %v277 = vld [vmem:[%s276] sm:$0xff]
        %v278 = vld [vmem:[%s276 + $0x8] sm:$0xff]
        %v279 = vld [vmem:[%s276 + $0x10] sm:$0xff]
        %v280 = vld [vmem:[%s1] sm:$0xff]
        %v281 = vld [vmem:[%s1 + $0x8] sm:$0xff]
        %v282 = vld [vmem:[%s1 + $0x10] sm:$0xff]
        %v283 = vld [vmem:[%s1 + $0x18] sm:$0xff]
        %v284 = vld [vmem:[%s1 + $0x20] sm:$0xff]
        %v285 = vld [vmem:[%s1 + $0x28] sm:$0xff]
        %v286 = vld [vmem:[%s1 + $0x30] sm:$0xff]
        %v287 = vld [vmem:[%s1 + $0x38] sm:$0xff]
        %v288 = vld [vmem:[%s2] sm:$0x3]
        %v290 = vperm.slane %v288, 0
        %v291 = vperm.slane %v288, 1
        %vm294 = vcmask 261120
        %v296 = vsel %vm294, %v277, 0
        %v299 = vsel %vm294, %v278, 0
        %v302 = vsel %vm294, %v279, 0
        %304 = vmatpush.msra.mxu0 0.0
        %305 = vmatpush.msra.mxu0 0.0
        %306 = vmatpush.msra.mxu0 0.0
        %307 = vmatpush.msra.mxu0 0.0
        %308 = vmatpush.msra.mxu0 0.0
        %309 = vmatpush.msra.mxu0 0.0
        %310 = vmatpush.msra.mxu0 0.0
        %311 = vmatpush.msra.mxu0 0.0
        %312 = vmatpush.msra.mxu0 0.0
        %313 = vmatpush.msra.mxu0 0.0
        %314 = vmatpush.msra.mxu0 0.0
        %315 = vmatpush.msra.mxu0 0.0
        %316 = vmatpush.msra.mxu0 %v286
        %317 = vmatpush.msra.mxu0 %v284
        %318 = vmatpush.msra.mxu0 %v282
        %319 = vmatpush.msra.mxu0 %v280
        %320 = vmatmul.f32.gmra.mxu0 %v296
        %v321 = vpop.f32.mrf.mxu0
        %v322 = vadd.f32 %v290, %v321
        %323 = vmatmul.f32.gmra.mxu0 %v299
        %v324 = vpop.f32.mrf.mxu0
        %v325 = vadd.f32 %v290, %v324
        %326 = vmatmul.f32.gmra.mxu0 %v302
        %v327 = vpop.f32.mrf.mxu0
        %v328 = vadd.f32 %v290, %v327
        %329 = vdwg.mxu0
        %330 = vmatpush.msra.mxu0 0.0
        %331 = vmatpush.msra.mxu0 0.0
        %332 = vmatpush.msra.mxu0 0.0
        %333 = vmatpush.msra.mxu0 0.0
        %334 = vmatpush.msra.mxu0 0.0
        %335 = vmatpush.msra.mxu0 0.0
        %336 = vmatpush.msra.mxu0 0.0
        %337 = vmatpush.msra.mxu0 0.0
        %338 = vmatpush.msra.mxu0 0.0
        %339 = vmatpush.msra.mxu0 0.0
        %340 = vmatpush.msra.mxu0 0.0
        %341 = vmatpush.msra.mxu0 0.0
        %342 = vmatpush.msra.mxu0 %v287
        %343 = vmatpush.msra.mxu0 %v285
        %344 = vmatpush.msra.mxu0 %v283
        %345 = vmatpush.msra.mxu0 %v281
        %346 = vmatmul.f32.gmra.mxu0 %v296
        %v347 = vpop.f32.mrf.mxu0
        %348 = vmatmul.f32.gmra.mxu0 %v299
        %v349 = vpop.f32.mrf.mxu0
        %v350 = vadd.f32 %v291, %v349
        %351 = vmatmul.f32.gmra.mxu0 %v302
        %v352 = vpop.f32.mrf.mxu0
        %353 = vdwg.mxu0
        %v354 = vld [vmem:[%s3] sm:$0xff]
        %s355 = scalar_lea.vmem %s3, 8
        %v356 = vld [vmem:[%s355] sm:$0xff]
        %v357 = vmul.f32 %v322, %v354
        %359 = vrot.lane.b32.xlu0 %v356, 96
        %v360 = vpop.permute.xlu0 %359
        %v362 = vmul.f32 %v322, %v360
        %364 = vrot.lane.b32.xlu0 %v362, 32
        %v365 = vpop.permute.xlu0 %364
        %v367 = vadd.f32 %v357, %v365
        %369 = vrot.lane.b32.xlu0 %v354, 32
        %v370 = vpop.permute.xlu0 %369
        %v372 = vmul.f32 %v325, %v370
        %v373 = vmul.f32 %v350, %v356
        %375 = vrot.lane.b32.xlu0 %v373, 32
        %v376 = vpop.permute.xlu0 %375
        %v378 = vadd.f32 %v372, %v376
        %380 = vrot.lane.b32.xlu0 %v367, 120
        %v381 = vpop.permute.xlu0 %380
        %382 = vrot.lane.b32.xlu0 %v367, 112
        %v383 = vpop.permute.xlu0 %382
        %384 = vrot.lane.b32.xlu0 %v367, 104
        %v385 = vpop.permute.xlu0 %384
        %387 = vrot.lane.b32.xlu0 %v378, 120
        %v388 = vpop.permute.xlu0 %387
        %389 = vrot.lane.b32.xlu0 %v378, 112
        %v390 = vpop.permute.xlu0 %389
        %391 = vrot.lane.b32.xlu0 %v378, 104
        %v392 = vpop.permute.xlu0 %391
        %394 = vrot.lane.b32.xlu0 %v328, 120
        %v395 = vpop.permute.xlu0 %394
        %396 = vrot.lane.b32.xlu0 %v328, 112
        %v397 = vpop.permute.xlu0 %396
        %398 = vrot.lane.b32.xlu0 %v328, 104
        %v399 = vpop.permute.xlu0 %398
        %v400 = vld [vmem:[%s4] sm:$0xff]
        %401 = vrot.lane.b32.xlu0 %v378, 96
        %v402 = vpop.permute.xlu0 %401
        %vm403 = vcmask 64512
        %v404 = vsel %vm403, %v367, 0
        %v406 = vsel %vm403, %v402, 0
        %408 = vmatpush.xpose.msra.mxu0 0.0
        %409 = vmatpush.xpose.msra.mxu0 0.0
        %410 = vmatpush.xpose.msra.mxu0 0.0
        %411 = vmatpush.xpose.msra.mxu0 0.0
        %412 = vmatpush.xpose.msra.mxu0 0.0
        %413 = vmatpush.xpose.msra.mxu0 0.0
        %414 = vmatpush.xpose.msra.mxu0 0.0
        %415 = vmatpush.xpose.msra.mxu0 0.0
        %416 = vmatpush.xpose.msra.mxu0 0.0
        %417 = vmatpush.xpose.msra.mxu0 0.0
        %418 = vmatpush.xpose.msra.mxu0 0.0
        %419 = vmatpush.xpose.msra.mxu0 0.0
        %420 = vmatpush.xpose.msra.mxu0 0.0
        %421 = vmatpush.xpose.msra.mxu0 0.0
        %422 = vmatpush.xpose.msra.mxu0 0.0
        %423 = vmatpush.xpose.msra.mxu0 %v406
        %424 = vmatmul.f32.gmra.mxu0 %v404
        %v425 = vpop.f32.mrf.mxu0
        %v426 = vadd.f32 %v400, %v425
        %427 = vdwg.mxu0
        %428 = vrot.lane.b32.xlu0 %v388, 96
        %v429 = vpop.permute.xlu0 %428
        %v430 = vsel %vm403, %v381, 0
        %v432 = vsel %vm403, %v429, 0
        %434 = vmatpush.xpose.msra.mxu0 0.0
        %435 = vmatpush.xpose.msra.mxu0 0.0
        %436 = vmatpush.xpose.msra.mxu0 0.0
        %437 = vmatpush.xpose.msra.mxu0 0.0
        %438 = vmatpush.xpose.msra.mxu0 0.0
        %439 = vmatpush.xpose.msra.mxu0 0.0
        %440 = vmatpush.xpose.msra.mxu0 0.0
        %441 = vmatpush.xpose.msra.mxu0 0.0
        %442 = vmatpush.xpose.msra.mxu0 0.0
        %443 = vmatpush.xpose.msra.mxu0 0.0
        %444 = vmatpush.xpose.msra.mxu0 0.0
        %445 = vmatpush.xpose.msra.mxu0 0.0
        %446 = vmatpush.xpose.msra.mxu0 0.0
        %447 = vmatpush.xpose.msra.mxu0 0.0
        %448 = vmatpush.xpose.msra.mxu0 0.0
        %449 = vmatpush.xpose.msra.mxu0 %v432
        %450 = vmatmul.f32.gmra.mxu0 %v430
        %v451 = vpop.f32.mrf.mxu0
        %v452 = vadd.f32 %v400, %v451
        %453 = vdwg.mxu0
        %454 = vrot.lane.b32.xlu0 %v390, 96
        %v455 = vpop.permute.xlu0 %454
        %v456 = vsel %vm403, %v383, 0
        %v458 = vsel %vm403, %v455, 0
        %460 = vmatpush.xpose.msra.mxu0 0.0
        %461 = vmatpush.xpose.msra.mxu0 0.0
        %462 = vmatpush.xpose.msra.mxu0 0.0
        %463 = vmatpush.xpose.msra.mxu0 0.0
        %464 = vmatpush.xpose.msra.mxu0 0.0
        %465 = vmatpush.xpose.msra.mxu0 0.0
        %466 = vmatpush.xpose.msra.mxu0 0.0
        %467 = vmatpush.xpose.msra.mxu0 0.0
        %468 = vmatpush.xpose.msra.mxu0 0.0
        %469 = vmatpush.xpose.msra.mxu0 0.0
        %470 = vmatpush.xpose.msra.mxu0 0.0
        %471 = vmatpush.xpose.msra.mxu0 0.0
        %472 = vmatpush.xpose.msra.mxu0 0.0
        %473 = vmatpush.xpose.msra.mxu0 0.0
        %474 = vmatpush.xpose.msra.mxu0 0.0
        %475 = vmatpush.xpose.msra.mxu0 %v458
        %476 = vmatmul.f32.gmra.mxu0 %v456
        %v477 = vpop.f32.mrf.mxu0
        %v478 = vadd.f32 %v400, %v477
        %479 = vdwg.mxu0
        %480 = vrot.lane.b32.xlu0 %v392, 96
        %v481 = vpop.permute.xlu0 %480
        %v482 = vsel %vm403, %v385, 0
        %v484 = vsel %vm403, %v481, 0
        %486 = vmatpush.xpose.msra.mxu0 0.0
        %487 = vmatpush.xpose.msra.mxu0 0.0
        %488 = vmatpush.xpose.msra.mxu0 0.0
        %489 = vmatpush.xpose.msra.mxu0 0.0
        %490 = vmatpush.xpose.msra.mxu0 0.0
        %491 = vmatpush.xpose.msra.mxu0 0.0
        %492 = vmatpush.xpose.msra.mxu0 0.0
        %493 = vmatpush.xpose.msra.mxu0 0.0
        %494 = vmatpush.xpose.msra.mxu0 0.0
        %495 = vmatpush.xpose.msra.mxu0 0.0
        %496 = vmatpush.xpose.msra.mxu0 0.0
        %497 = vmatpush.xpose.msra.mxu0 0.0
        %498 = vmatpush.xpose.msra.mxu0 0.0
        %499 = vmatpush.xpose.msra.mxu0 0.0
        %500 = vmatpush.xpose.msra.mxu0 0.0
        %501 = vmatpush.xpose.msra.mxu0 %v484
        %502 = vmatmul.f32.gmra.mxu0 %v482
        %v503 = vpop.f32.mrf.mxu0
        %v504 = vadd.f32 %v400, %v503
        %505 = vdwg.mxu0
        %v506 = vsel %vm403, %v426, -inf
        %507 = vmax.xlane.f32.xlu0 %v506
        %v508 = vpop.xlane.xlu0 %507
        %v509 = vsel %vm403, %v452, -inf
        %510 = vmax.xlane.f32.xlu0 %v509
        %v511 = vpop.xlane.xlu0 %510
        %v512 = vsel %vm403, %v478, -inf
        %513 = vmax.xlane.f32.xlu0 %v512
        %v514 = vpop.xlane.xlu0 %513
        %v515 = vsel %vm403, %v504, -inf
        %516 = vmax.xlane.f32.xlu0 %v515
        %v517 = vpop.xlane.xlu0 %516
        %v518 = vsub.f32 %v426, %v508
        %v519 = vsub.f32 %v452, %v511
        %v520 = vsub.f32 %v478, %v514
        %v521 = vsub.f32 %v504, %v517
        %v522 = vmul.f32 %v518, 1.442695
        %v523 = vpow.pop %v522
        %v524 = vmul.f32 %v519, 1.442695
        %v525 = vpow.pop %v524
        %v526 = vmul.f32 %v520, 1.442695
        %v527 = vpow.pop %v526
        %v528 = vmul.f32 %v521, 1.442695
        %v529 = vpow.pop %v528
        %v530 = vsel %vm403, %v523, 0.0
        %531 = vadd.xlane.f32.xlu0 %v530
        %v532 = vpop.xlane.xlu0 %531
        %v533 = vsel %vm403, %v525, 0.0
        %534 = vadd.xlane.f32.xlu0 %v533
        %v535 = vpop.xlane.xlu0 %534
        %v536 = vsel %vm403, %v527, 0.0
        %537 = vadd.xlane.f32.xlu0 %v536
        %v538 = vpop.xlane.xlu0 %537
        %v539 = vsel %vm403, %v529, 0.0
        %540 = vadd.xlane.f32.xlu0 %v539
        %v541 = vpop.xlane.xlu0 %540
        %542 = vrot.lane.b32.xlu0 %v328, 64
        %v543 = vpop.permute.xlu0 %542
        %v546 = vsel %vm403, %v523, 0
        %548 = vmatpush.msra.mxu0 0.0
        %549 = vmatpush.msra.mxu0 0.0
        %550 = vmatpush.msra.mxu0 0.0
        %551 = vmatpush.msra.mxu0 0.0
        %552 = vmatpush.msra.mxu0 0.0
        %553 = vmatpush.msra.mxu0 0.0
        %554 = vmatpush.msra.mxu0 0.0
        %555 = vmatpush.msra.mxu0 0.0
        %556 = vmatpush.msra.mxu0 0.0
        %557 = vmatpush.msra.mxu0 0.0
        %558 = vmatpush.msra.mxu0 0.0
        %559 = vmatpush.msra.mxu0 0.0
        %560 = vmatpush.msra.mxu0 0.0
        %561 = vmatpush.msra.mxu0 0.0
        %562 = vmatpush.msra.mxu0 0.0
        %563 = vmatpush.msra.mxu0 %v543
        %564 = vmatmul.f32.gmra.mxu0 %v546
        %v565 = vpop.f32.mrf.mxu0
        %v566 = vadd.f32 0.0, %v565
        %567 = vdwg.mxu0
        %568 = vrot.lane.b32.xlu0 %v395, 64
        %v569 = vpop.permute.xlu0 %568
        %v572 = vsel %vm403, %v525, 0
        %574 = vmatpush.msra.mxu0 0.0
        %575 = vmatpush.msra.mxu0 0.0
        %576 = vmatpush.msra.mxu0 0.0
        %577 = vmatpush.msra.mxu0 0.0
        %578 = vmatpush.msra.mxu0 0.0
        %579 = vmatpush.msra.mxu0 0.0
        %580 = vmatpush.msra.mxu0 0.0
        %581 = vmatpush.msra.mxu0 0.0
        %582 = vmatpush.msra.mxu0 0.0
        %583 = vmatpush.msra.mxu0 0.0
        %584 = vmatpush.msra.mxu0 0.0
        %585 = vmatpush.msra.mxu0 0.0
        %586 = vmatpush.msra.mxu0 0.0
        %587 = vmatpush.msra.mxu0 0.0
        %588 = vmatpush.msra.mxu0 0.0
        %589 = vmatpush.msra.mxu0 %v569
        %590 = vmatmul.f32.gmra.mxu0 %v572
        %v591 = vpop.f32.mrf.mxu0
        %v592 = vadd.f32 0.0, %v591
        %593 = vdwg.mxu0
        %594 = vrot.lane.b32.xlu0 %v397, 64
        %v595 = vpop.permute.xlu0 %594
        %v598 = vsel %vm403, %v527, 0
        %600 = vmatpush.msra.mxu0 0.0
        %601 = vmatpush.msra.mxu0 0.0
        %602 = vmatpush.msra.mxu0 0.0
        %603 = vmatpush.msra.mxu0 0.0
        %604 = vmatpush.msra.mxu0 0.0
        %605 = vmatpush.msra.mxu0 0.0
        %606 = vmatpush.msra.mxu0 0.0
        %607 = vmatpush.msra.mxu0 0.0
        %608 = vmatpush.msra.mxu0 0.0
        %609 = vmatpush.msra.mxu0 0.0
        %610 = vmatpush.msra.mxu0 0.0
        %611 = vmatpush.msra.mxu0 0.0
        %612 = vmatpush.msra.mxu0 0.0
        %613 = vmatpush.msra.mxu0 0.0
        %614 = vmatpush.msra.mxu0 0.0
        %615 = vmatpush.msra.mxu0 %v595
        %616 = vmatmul.f32.gmra.mxu0 %v598
        %v617 = vpop.f32.mrf.mxu0
        %v618 = vadd.f32 0.0, %v617
        %619 = vdwg.mxu0
        %620 = vrot.lane.b32.xlu0 %v399, 64
        %v621 = vpop.permute.xlu0 %620
        %v624 = vsel %vm403, %v529, 0
        %626 = vmatpush.msra.mxu0 0.0
        %627 = vmatpush.msra.mxu0 0.0
        %628 = vmatpush.msra.mxu0 0.0
        %629 = vmatpush.msra.mxu0 0.0
        %630 = vmatpush.msra.mxu0 0.0
        %631 = vmatpush.msra.mxu0 0.0
        %632 = vmatpush.msra.mxu0 0.0
        %633 = vmatpush.msra.mxu0 0.0
        %634 = vmatpush.msra.mxu0 0.0
        %635 = vmatpush.msra.mxu0 0.0
        %636 = vmatpush.msra.mxu0 0.0
        %637 = vmatpush.msra.mxu0 0.0
        %638 = vmatpush.msra.mxu0 0.0
        %639 = vmatpush.msra.mxu0 0.0
        %640 = vmatpush.msra.mxu0 0.0
        %641 = vmatpush.msra.mxu0 %v621
        %642 = vmatmul.f32.gmra.mxu0 %v624
        %v643 = vpop.f32.mrf.mxu0
        %v644 = vadd.f32 0.0, %v643
        %645 = vdwg.mxu0
        %v646 = vrcp.pop %v532
        %v647 = vrcp.pop %v535
        %v648 = vrcp.pop %v538
        %v649 = vrcp.pop %v541
        %v650 = vmul.f32 %v566, %v646
        %v651 = vmul.f32 %v592, %v647
        %v652 = vmul.f32 %v618, %v648
        %v653 = vmul.f32 %v644, %v649
        %655 = vrot.lane.b32.xlu0 %v651, 8
        %v656 = vpop.permute.xlu0 %655
        %659 = vrot.lane.b32.xlu0 %v652, 16
        %v660 = vpop.permute.xlu0 %659
        %663 = vrot.lane.b32.xlu0 %v653, 24
        %v664 = vpop.permute.xlu0 %663
        %v666 = vsel %vm403, %v650, %v656
        %vm667 = vcmask 130048
        %v668 = vsel %vm667, %v666, %v660
        %vm669 = vcmask 195584
        %v670 = vsel %vm669, %v668, %v664
        %v671 = vld [vmem:[%s5] sm:$0xff]
        %v672 = vld [vmem:[%s5 + $0x8] sm:$0xff]
        %v673 = vld [vmem:[%s5 + $0x10] sm:$0xff]
        %v674 = vld [vmem:[%s5 + $0x18] sm:$0xff]
        %v675 = vld [vmem:[%s6] sm:$0x1]
        %v677 = vperm.slane %v675, 0
        %v680 = vsel %vm294, %v670, 0
        %682 = vmatpush.msra.mxu0 0.0
        %683 = vmatpush.msra.mxu0 0.0
        %684 = vmatpush.msra.mxu0 0.0
        %685 = vmatpush.msra.mxu0 0.0
        %686 = vmatpush.msra.mxu0 0.0
        %687 = vmatpush.msra.mxu0 0.0
        %688 = vmatpush.msra.mxu0 0.0
        %689 = vmatpush.msra.mxu0 0.0
        %690 = vmatpush.msra.mxu0 0.0
        %691 = vmatpush.msra.mxu0 0.0
        %692 = vmatpush.msra.mxu0 0.0
        %693 = vmatpush.msra.mxu0 0.0
        %694 = vmatpush.msra.mxu0 %v674
        %695 = vmatpush.msra.mxu0 %v673
        %696 = vmatpush.msra.mxu0 %v672
        %697 = vmatpush.msra.mxu0 %v671
        %698 = vmatmul.f32.gmra.mxu0 %v680
        %v699 = vpop.f32.mrf.mxu0
        %v700 = vadd.f32 %v677, %v699
        %701 = vdwg.mxu0
        %702 = vst [vmem:[%s271] sm:$0xff] %v700
        %s703 = sand.u32 %s181, 1
        %s704 = scalar_lea.sflag [#allocation3], %s703
        %s705 = sand.u32 %s181, 1
        %s706 = smul.addr %s705, 8
        %s707 = scalar_lea.vmem [#allocation2], %s706
        // Predicated region
        $region49: #{attention_forward.1} parent=47 // pred_check
          %p708 = pneg %p191
        $region50: #{attention_forward.1} parent=47 // pred_check_branch
          %710 = sbr.rel (%p708) target = $region52
        $region51: #{attention_forward.1} parent=47 // pred_region
          %712 = vsyncadd %s704, 0
          %s713 = smul.addr %s21, 8
          %s714 = scalar_lea.hbm %s7, %s713
          %s716 = sshll.u32 %s707, 4
          %s717 = int_to_ptr.vmem [resolvable:$true] %s716
          %s718 = sshll.u32 %s714, 4
          %s719 = int_to_ptr.hbm [resolvable:$true] %s718
          %721 = dma.vmem_to_hbm [thread:$0]  %s717, 128, %s719, %s704
        $region52: #{attention_forward.1} parent=47 // pred_fallthru
          _
      $region48: #{attention_forward.1} parent=5 // pred_fallthru
        _
      %p722 = scmp.le.s32.totalorder 2, %s16
      // Predicated region
      $region53: #{attention_forward.1} parent=5 // pred_check
        %p723 = pneg %p722
      $region54: #{attention_forward.1} parent=5 // pred_check_branch
        %725 = sbr.rel (%p723) target = $region56
      $region55: #{attention_forward.1} parent=5 // pred_region
        %s726 = ssub.s32 %s16, 2
        // Predicated region
        $region57: #{attention_forward.1} parent=55 // pred_check
          %p727 = pneg %p197
        $region58: #{attention_forward.1} parent=55 // pred_check_branch
          %729 = sbr.rel (%p727) target = $region60
        $region59: #{attention_forward.1} parent=55 // pred_region
          %s730 = sand.u32 %s182, 1
          %s731 = scalar_lea.sflag [#allocation3], %s730
          %s732 = sand.u32 %s182, 1
          %s733 = smul.addr %s732, 8
          %s734 = scalar_lea.vmem [#allocation2], %s733
          %736 = dma.done %s731, 128
        $region60: #{attention_forward.1} parent=55 // pred_fallthru
          _
      $region56: #{attention_forward.1} parent=5 // pred_fallthru
        _
    $region6: #{attention_forward.1} parent=1 // loop_footer
      %s20 = sadd.s32 1, %s16
    $region7: #{attention_forward.1} parent=1 // loop_footer_branch
      %15 = sbr.rel target = $region3
    $region8: #{attention_forward.1} parent=1 // loop_exit
      _
    %737 = vsyncpa [#allocation3], 1
    %s738 = scalar_lea.sflag [#allocation3], 1
    %739 = vsyncpa %s738, 1

</llo_original>
